<compile_context>
chip_gen: v5e
topology: v5e:2x2
jax: 0.10.0
libtpu: 0.0.40
codegen_flags: <defaults>
</compile_context>

<pallas_src>
import math

import jax
import jax.numpy as jnp
from jax.experimental import pallas as pl
from jax.experimental.pallas import tpu as pltpu

_LANE = 128
_TARGET_TILE_BYTES = 2 * 1024 * 1024  # per input tile; x in/out double-buffered ~8 MiB


def _detrend_kernel(x_ref, mean_ref, o_ref):
    # x_ref: (tile_r, W) tile, mean_ref: (1, W) signed mean (resident).
    # Pure streaming broadcast add: vld + vadd + vst.
    o_ref[...] = x_ref[...] + mean_ref[...]


def _choose_layout(B, T, C):
    """Pick a lane-dense 2D view (R, W) of the (B, T, C) tensor if possible."""
    N = B * T * C
    L = math.lcm(C, _LANE)
    if N % L == 0:
        W = L          # lane-dense: last dim is a multiple of 128
    else:
        W = C          # fallback for awkward sizes: features stay on lanes (full dim)
    return N // W, W


def _choose_row_tile(R, W, itemsize):
    """Large row tile, sublane-aligned, capped by a VMEM-friendly byte budget."""
    sub = max(8, 32 // itemsize)  # sublane packing: 8 (f32) / 16 (bf16) / 32 (int8)
    tile = max(sub, _TARGET_TILE_BYTES // (W * itemsize))
    tile = (tile // sub) * sub
    tile = min(tile, R)
    if R % sub != 0:
        # Second-to-last block dim must be a multiple of `sub` or the full dim.
        tile = R
    return max(tile, 1)


def detrender_forward(x, mean, mode: str):
    """Equivalent of Detrender.forward(x, mode).

    x:    (B, T, C) array
    mean: (1, 1, C) running-mean parameter
    mode: 'norm' | 'denorm'
    """
    if mode == "norm":
        mean_signed = -mean      # fold the sign into the mean on the host
    elif mode == "denorm":
        mean_signed = mean
    else:
        raise NotImplementedError(mode)

    B, T, C = x.shape
    assert mean.shape == (1, 1, C)
    dtype = x.dtype
    itemsize = jnp.dtype(dtype).itemsize
    mean_signed = mean_signed.astype(dtype)

    R, W = _choose_layout(B, T, C)
    tile_r = _choose_row_tile(R, W, itemsize)
    grid = (pl.cdiv(R, tile_r),)

    x2 = x.reshape(R, W)  # pure reshape (row-major), no data movement
    # The flattened row repeats the C-length feature pattern W // C times.
    mean_row = jnp.tile(mean_signed.reshape(1, C), (1, W // C))

    n_bytes = R * W * itemsize
    cost = pl.CostEstimate(
        flops=R * W,
        transcendentals=0,
        bytes_accessed=2 * n_bytes + W * itemsize,
    )

    out2 = pl.pallas_call(
        _detrend_kernel,
        out_shape=jax.ShapeDtypeStruct((R, W), dtype),
        grid_spec=pltpu.PrefetchScalarGridSpec(
            num_scalar_prefetch=0,
            grid=grid,
            in_specs=[
                pl.BlockSpec((tile_r, W), lambda i: (i, 0)),
                pl.BlockSpec((1, W), lambda i: (0, 0)),  # constant index: resident
            ],
            out_specs=pl.BlockSpec((tile_r, W), lambda i: (i, 0)),
        ),
        compiler_params=pltpu.CompilerParams(
            dimension_semantics=("parallel",),
            vmem_limit_bytes=32 * 1024 * 1024,
        ),
        cost_estimate=cost,
        # NOTE: callers that can donate `x` may additionally pass
        # input_output_aliases={0: 0} to avoid the extra output allocation.
    )(x2, mean_row)

    return out2.reshape(B, T, C)


if __name__ == "__main__":
    key = jax.random.PRNGKey(0)
    kx1, kx2, km = jax.random.split(key, 3)

    # Parameter from __init__ is zeros(1, 1, num_features); use a nonzero
    # deterministic value (as if _update_statistics had run) to exercise the op.
    C = 4
    mean = 0.1 * jax.random.normal(km, (1, 1, C), dtype=jnp.float32)

    # Case 1: tiny, awkward size (N not a multiple of 128) -> fallback layout.
    B1, T1 = 2, 8
    x1 = jax.random.normal(kx1, (B1, T1, C), dtype=jnp.float32)
    y1 = detrender_forward(x1, mean, mode="norm")
    z1 = detrender_forward(y1, mean, mode="denorm")
    jax.block_until_ready(z1)
    assert jnp.allclose(y1, x1 - mean, atol=1e-6), "norm mismatch (case 1)"
    assert jnp.allclose(z1, x1, atol=1e-6), "round-trip mismatch (case 1)"

    # Case 2: element count divisible by 128 -> lane-dense flattened layout.
    B2, T2 = 2, 64
    x2 = jax.random.normal(kx2, (B2, T2, C), dtype=jnp.float32)
    y2 = detrender_forward(x2, mean, mode="norm")
    z2 = detrender_forward(y2, mean, mode="denorm")
    jax.block_until_ready(z2)
    assert jnp.allclose(y2, x2 - mean, atol=1e-6), "norm mismatch (case 2)"
    assert jnp.allclose(z2, x2, atol=1e-6), "round-trip mismatch (case 2)"

    print("KERNEL_OK")
</pallas_src>

<mosaic_0001>
module attributes {stable_mosaic.version = 11 : i64} {
  func.func @_detrend_kernel(%arg0: i32, %arg1: memref<16x4xf32, #tpu.memory_space<vmem>>, %arg2: memref<1x4xf32, #tpu.memory_space<vmem>>, %arg3: memref<16x4xf32, #tpu.memory_space<vmem>>) attributes {dimension_semantics = [#tpu.dimension_semantics<parallel>], iteration_bounds = array<i64: 1>, scalar_prefetch = 0 : i64, scratch_operands = 0 : i64, tpu.core_type = #tpu.core_type<tc>, window_params = [{transform_indices = @transform_0, window_bounds = array<i64: 16, 4>}, {pipeline_mode = #tpu.pipeline_mode<synchronous>, transform_indices = @transform_1, window_bounds = array<i64: 1, 4>}, {transform_indices = @transform_2, window_bounds = array<i64: 16, 4>}]} {
    %c0 = arith.constant 0 : index
    %c0_0 = arith.constant 0 : index
    %0 = vector.load %arg1[%c0, %c0_0] : memref<16x4xf32, #tpu.memory_space<vmem>>, vector<16x4xf32>
    %c0_1 = arith.constant 0 : index
    %c0_2 = arith.constant 0 : index
    %1 = vector.load %arg2[%c0_1, %c0_2] : memref<1x4xf32, #tpu.memory_space<vmem>>, vector<1x4xf32>
    %2 = vector.broadcast %1 : vector<1x4xf32> to vector<16x4xf32>
    %3 = arith.addf %0, %2 : vector<16x4xf32>
    %c0_3 = arith.constant 0 : index
    %c0_4 = arith.constant 0 : index
    %4 = vector.load %arg3[%c0_3, %c0_4] : memref<16x4xf32, #tpu.memory_space<vmem>>, vector<16x4xf32>
    tpu.vector_store %arg3[%c0_3, %c0_4], %3 {strides = array<i32>} : memref<16x4xf32, #tpu.memory_space<vmem>>, vector<16x4xf32>,
    return
  }
  func.func @transform_0(%arg0: i32) -> (i32, i32) {
    %c0_i32 = arith.constant 0 : i32
    %c0_i32_0 = arith.constant 0 : i32
    return %arg0, %c0_i32 : i32, i32
  }
  func.func @transform_1(%arg0: i32) -> (i32, i32) {
    %c0_i32 = arith.constant 0 : i32
    %c0_i32_0 = arith.constant 0 : i32
    %c0_i32_1 = arith.constant 0 : i32
    return %c0_i32, %c0_i32_0 : i32, i32
  }
  func.func @transform_2(%arg0: i32) -> (i32, i32) {
    %c0_i32 = arith.constant 0 : i32
    %c0_i32_0 = arith.constant 0 : i32
    return %arg0, %c0_i32 : i32, i32
  }
}

</mosaic_0001>

<llo_original>
// kernel: tpu_custom_call.1
$region0: #{tpu_custom_call.1}
  #allocation0 [shape = 'u32[]', space=smem, size = 0x4, offset = 0x4, fixed_abs, tag = 'smem constant byte address 0x4 - core index']
  #allocation1 [shape = 'u32[72,128]{1,0:T(1,128)}', space=vmem, size = 0x9000, scoped, tag = 'internal scratch']
  %s0 = inlined_call_operand.vmem [shape: f32[16,4], index: 0, kind: input, shape index: {}]
  %s1 = inlined_call_operand.vmem [shape: f32[1,4], index: 1, kind: input, shape index: {}]
  %s2 = inlined_call_operand.vmem [shape: f32[16,4], index: 2, kind: output, shape index: {}]
  %s3 = sld [smem:[#allocation0]]
  $region18: #{tpu_custom_call.1} parent=0
    _
  %s5 = ssub.s32 1, %s3
  %s6 = scalar_select 0, %s5, %s3
  // Predicated region
  $region2: #{tpu_custom_call.1} parent=0 // pred_check
    _
  $region3: #{tpu_custom_call.1} parent=0 // pred_check_branch
    %8 = sbr.rel (0) target = $region5
  $region4: #{tpu_custom_call.1} parent=0 // pred_region
    _
  $region5: #{tpu_custom_call.1} parent=0 // pred_fallthru
    _
  // Predicated region
  $region6: #{tpu_custom_call.1} parent=0 // pred_check
    _
  $region7: #{tpu_custom_call.1} parent=0 // pred_check_branch
    %10 = sbr.rel (0) target = $region9
  $region8: #{tpu_custom_call.1} parent=0 // pred_region
    _
  $region9: #{tpu_custom_call.1} parent=0 // pred_fallthru
    _
  %v11 = vld [vmem:[%s0] sm:$0xff]
  %v12 = vld [vmem:[%s0 + $0x8] sm:$0xff]
  %v13 = vld [vmem:[%s1] sm:$0x1]
  %v15 = vperm.slane %v13, 0
  %v17 = vadd.f32 %v11, %v15
  %v18 = vadd.f32 %v12, %v15
  %vm19 = vcmask 31744
  %20 = vst.msk [vmem:[%s2] sm:$0xff] %vm19, %v17
  %21 = vst.msk [vmem:[%s2 + $0x8] sm:$0xff] %vm19, %v18
  // Predicated region
  $region10: #{tpu_custom_call.1} parent=0 // pred_check
    _
  $region11: #{tpu_custom_call.1} parent=0 // pred_check_branch
    %23 = sbr.rel (0) target = $region13
  $region12: #{tpu_custom_call.1} parent=0 // pred_region
    _
  $region13: #{tpu_custom_call.1} parent=0 // pred_fallthru
    _
  // Predicated region
  $region14: #{tpu_custom_call.1} parent=0 // pred_check
    _
  $region15: #{tpu_custom_call.1} parent=0 // pred_check_branch
    %25 = sbr.rel (0) target = $region17
  $region16: #{tpu_custom_call.1} parent=0 // pred_region
    _
  $region17: #{tpu_custom_call.1} parent=0 // pred_fallthru
    _

</llo_original>
